<compile_context>
chip_gen: v7x
topology: tpu7x:2x2x1
jax: 0.10.0
libtpu: 0.0.40
codegen_flags: <defaults>
</compile_context>

<pallas_src>
import jax
import jax.numpy as jnp
from jax.experimental import pallas as pl
from jax.experimental.pallas import tpu as pltpu


def _round_up(x: int, m: int) -> int:
    return ((x + m - 1) // m) * m


def _relu_row_max_kernel(x_ref, out_ref):
    """Running relu-max over the spatial (lane) axis.

    x_ref:   (TR, TH) tile of the flattened (N*C, H*W) activations.
    out_ref: (TR, 128) running-max accumulator, resident across the spatial
             grid axis.  Zero init subsumes clamp(min=0) since max(0,x)=relu(x),
             and also makes zero spatial padding exact.
    """
    h = pl.program_id(1)

    @pl.when(h == 0)
    def _():
        out_ref[...] = jnp.zeros_like(out_ref)

    _, th = x_ref.shape
    acc = out_ref[...]
    # Elementwise (VPU) running max over 128-lane-aligned chunks; no per-tile
    # cross-lane (XLU) reduction — that happens once in the JAX epilogue.
    for c in range(th // 128):
        acc = jnp.maximum(acc, x_ref[:, c * 128:(c + 1) * 128])
    out_ref[...] = acc


def sparsity_loss(activations: jax.Array) -> jax.Array:
    """Pallas implementation of SparsityLoss.forward (scalar f32)."""
    N, C, H, W = activations.shape
    R, HW = N * C, H * W
    x2 = activations.reshape(R, HW)

    # Tile sizes: rows on sublanes (multiple of 8), spatial on lanes
    # (multiple of 128).  Double-buffered tiles stay well under the scoped
    # VMEM limit on v5e / v6e / v7x, and vreg pressure stays low
    # (acc 16 vregs + one 128-lane chunk at a time).
    TR = min(128, _round_up(R, 8))
    TH = min(2048, _round_up(HW, 128))
    R_pad = _round_up(R, TR)
    HW_pad = _round_up(HW, TH)
    if (R_pad, HW_pad) != (R, HW):
        # Zero padding is exact: spatial zeros can never exceed the relu'd
        # max (>= 0), and padded rows are sliced away below.
        x2 = jnp.pad(x2, ((0, R_pad - R), (0, HW_pad - HW)))

    itemsize = jnp.dtype(x2.dtype).itemsize
    grid = (R_pad // TR, HW_pad // TH)

    row_max = pl.pallas_call(
        _relu_row_max_kernel,
        out_shape=jax.ShapeDtypeStruct((R_pad, 128), x2.dtype),
        grid_spec=pltpu.PrefetchScalarGridSpec(
            num_scalar_prefetch=0,
            grid=grid,
            in_specs=[pl.BlockSpec((TR, TH), lambda r, h: (r, h))],
            out_specs=pl.BlockSpec((TR, 128), lambda r, h: (r, 0)),
        ),
        compiler_params=pltpu.CompilerParams(
            dimension_semantics=("parallel", "arbitrary"),
            vmem_limit_bytes=32 * 1024 * 1024,
        ),
        cost_estimate=pl.CostEstimate(
            flops=R_pad * HW_pad,
            transcendentals=0,
            bytes_accessed=R_pad * HW_pad * itemsize + R_pad * 128 * itemsize,
        ),
    )(x2)

    # Tiny O(N*C) epilogue in plain JAX: final lane reduce, mask, masked mean.
    a = jnp.max(row_max[:R].astype(jnp.float32), axis=-1)        # (N*C,)
    a = a.reshape(N, C) * (1.0 / float(HW))                      # (N, C)
    mask = jnp.max(a, axis=0) > 0.0        # == (a.sum(0) > 0) since a >= 0
    num = jnp.sum(jnp.where(mask[None, :], a, 0.0))
    den = jnp.sum(mask.astype(jnp.float32)) * float(N)
    return num / den                       # 0/0 -> NaN for empty selection, matching torch


def _sparsity_loss_ref(activations: jax.Array) -> jax.Array:
    """Pure-JAX reference of the PyTorch forward (for verification only)."""
    N, C, H, W = activations.shape
    a = jnp.max(jnp.maximum(activations, 0.0), axis=(2, 3)) / (H * W)   # (N, C)
    mask = jnp.sum(a, axis=0) > 0
    num = jnp.sum(jnp.where(mask[None, :], a, 0.0))
    den = jnp.sum(mask.astype(jnp.float32)) * N
    return num / den


if __name__ == "__main__":
    key = jax.random.PRNGKey(0)
    # Small shapes consistent with a conv-layer activation hook: NCHW
    N, C, H, W = 2, 4, 16, 16
    activations = jax.random.normal(key, (N, C, H, W), dtype=jnp.float32)

    # (out, label) exist in the PyTorch signature but are unused by forward.
    loss = sparsity_loss(activations)
    jax.block_until_ready(loss)

    ref = _sparsity_loss_ref(activations)
    assert jnp.allclose(loss, ref, rtol=1e-6, atol=1e-6), (loss, ref)

    print("KERNEL_OK")
</pallas_src>

<mosaic_0001>
module attributes {stable_mosaic.version = 11 : i64} {
  func.func @_relu_row_max_kernel(%arg0: i32, %arg1: i32, %arg2: memref<8x256xf32, #tpu.memory_space<vmem>>, %arg3: memref<8x128xf32, #tpu.memory_space<vmem>>) attributes {dimension_semantics = [#tpu.dimension_semantics<parallel>, #tpu.dimension_semantics<arbitrary>], iteration_bounds = array<i64: 1, 1>, scalar_prefetch = 0 : i64, scratch_operands = 0 : i64, tpu.core_type = #tpu.core_type<tc>, window_params = [{transform_indices = @transform_0, window_bounds = array<i64: 8, 256>}, {transform_indices = @transform_1, window_bounds = array<i64: 8, 128>}]} {
    %c0_i32 = arith.constant 0 : i32
    %0 = arith.cmpi eq, %arg1, %c0_i32 : i32
    %1 = arith.extui %0 : i1 to i32
    %c0_i32_0 = arith.constant 0 : i32
    %2 = arith.cmpi ne, %1, %c0_i32_0 : i32
    scf.if %2 {
      %cst = arith.constant 0.000000e+00 : f32
      %9 = vector.broadcast %cst : f32 to vector<8x128xf32>
      %c0_7 = arith.constant 0 : index
      %c0_8 = arith.constant 0 : index
      %10 = vector.load %arg3[%c0_7, %c0_8] : memref<8x128xf32, #tpu.memory_space<vmem>>, vector<8x128xf32>
      tpu.vector_store %arg3[%c0_7, %c0_8], %9 {strides = array<i32>} : memref<8x128xf32, #tpu.memory_space<vmem>>, vector<8x128xf32>,
    } else {
    }
    %c0 = arith.constant 0 : index
    %c0_1 = arith.constant 0 : index
    %3 = vector.load %arg3[%c0, %c0_1] : memref<8x128xf32, #tpu.memory_space<vmem>>, vector<8x128xf32>
    %c0_2 = arith.constant 0 : index
    %c0_3 = arith.constant 0 : index
    %4 = vector.load %arg2[%c0_2, %c0_3] : memref<8x256xf32, #tpu.memory_space<vmem>>, vector<8x128xf32>
    %5 = arith.maximumf %3, %4 : vector<8x128xf32>
    %c0_4 = arith.constant 0 : index
    %c128 = arith.constant 128 : index
    %6 = vector.load %arg2[%c0_4, %c128] : memref<8x256xf32, #tpu.memory_space<vmem>>, vector<8x128xf32>
    %7 = arith.maximumf %5, %6 : vector<8x128xf32>
    %c0_5 = arith.constant 0 : index
    %c0_6 = arith.constant 0 : index
    %8 = vector.load %arg3[%c0_5, %c0_6] : memref<8x128xf32, #tpu.memory_space<vmem>>, vector<8x128xf32>
    tpu.vector_store %arg3[%c0_5, %c0_6], %7 {strides = array<i32>} : memref<8x128xf32, #tpu.memory_space<vmem>>, vector<8x128xf32>,
    return
  }
  func.func @transform_0(%arg0: i32, %arg1: i32) -> (i32, i32) {
    %c0_i32 = arith.constant 0 : i32
    return %arg0, %arg1 : i32, i32
  }
  func.func @transform_1(%arg0: i32, %arg1: i32) -> (i32, i32) {
    %c0_i32 = arith.constant 0 : i32
    %c0_i32_0 = arith.constant 0 : i32
    return %arg0, %c0_i32 : i32, i32
  }
}

</mosaic_0001>

<llo_original>
// kernel: tpu_custom_call.1
$region0: #{tpu_custom_call.1}
  #allocation0 [shape = 'u32[]', space=smem, size = 0x4, offset = 0x4, fixed_abs, tag = 'smem constant byte address 0x4 - core index']
  #allocation1 [shape = 'u32[144,128]{1,0:T(1,128)}', space=vmem, size = 0x12000, scoped, tag = 'internal scratch']
  %s0 = inlined_call_operand.hbm [shape: f32[8,256], index: 0, kind: input, shape index: {}]
  %s1 = inlined_call_operand.hbm [shape: f32[8,128], index: 1, kind: output, shape index: {}]
  %s2 = sld [smem:[#allocation0]]
  $region22: #{tpu_custom_call.1} parent=0
    _
  %s4 = ssub.s32 1, %s2
  %s5 = scalar_select 0, %s4, %s2
  $region1: #{tpu_custom_call.1} parent=0
    #allocation2 [shape = 'u8[8192]{0}', space=vmem, size = 0x2000, scoped, tag = 'input window, operand 0, single buffered']
    #allocation3 [shape = 's32[1]{0}', space=sflag, size = 0x4, scoped, tag = 'scoped memory for tpu_custom_call.1']
    #allocation4 [shape = 's32[1]{0}', space=sflag, size = 0x4, scoped, tag = 'scoped memory for tpu_custom_call.1']
    #allocation5 [shape = 'u8[4096]{0}', space=vmem, size = 0x1000, scoped, tag = 'output window, operand 0, single buffered']
    %6 = vsyncpa [#allocation3], 0
    %7 = vsyncpa [#allocation4], 0
    // Predicated region
    $region2: #{tpu_custom_call.1} parent=1 // pred_check
      _
    $region3: #{tpu_custom_call.1} parent=1 // pred_check_branch
      %9 = sbr.rel (0) target = $region5
    $region4: #{tpu_custom_call.1} parent=1 // pred_region
      %s11 = ssub.s32 256, 256
      %12 = vsyncadd [#allocation3], %s11
      %s14 = sshll.u32 [#allocation2], 4
      %s15 = int_to_ptr.vmem [resolvable:$true] %s14
      %17 = dma.hbm_to_vmem [thread:$0]  %s0, 256, %s15, [#allocation3]
    $region5: #{tpu_custom_call.1} parent=1 // pred_fallthru
      _
    // Predicated region
    $region6: #{tpu_custom_call.1} parent=1 // pred_check
      _
    $region7: #{tpu_custom_call.1} parent=1 // pred_check_branch
      %19 = sbr.rel (0) target = $region9
    $region8: #{tpu_custom_call.1} parent=1 // pred_region
      %20 = dma.done [#allocation3], 256
    $region9: #{tpu_custom_call.1} parent=1 // pred_fallthru
      _
    %p21 = scmp.eq.s32.totalorder 0, 0
    // Predicated region
    $region10: #{tpu_custom_call.1} parent=1 // pred_check
      %p22 = pneg %p21
    $region11: #{tpu_custom_call.1} parent=1 // pred_check_branch
      %24 = sbr.rel (%p22) target = $region13
    $region12: #{tpu_custom_call.1} parent=1 // pred_region
      %25 = vst [vmem:[#allocation5] sm:$0xff] 0.0
    $region13: #{tpu_custom_call.1} parent=1 // pred_fallthru
      _
    %v26 = vld [vmem:[#allocation5] sm:$0xff]
    %v27 = vld [vmem:[#allocation2] sm:$0xff]
    %v28 = vmax.f32 %v26, %v27
    %v29 = vld [vmem:[#allocation2 + $0x8] sm:$0xff]
    %v30 = vmax.f32 %v28, %v29
    %31 = vst [vmem:[#allocation5] sm:$0xff] %v30
    // Predicated region
    $region14: #{tpu_custom_call.1} parent=1 // pred_check
      _
    $region15: #{tpu_custom_call.1} parent=1 // pred_check_branch
      %33 = sbr.rel (0) target = $region17
    $region16: #{tpu_custom_call.1} parent=1 // pred_region
      %s35 = ssub.s32 128, 128
      %36 = vsyncadd [#allocation4], %s35
      %s38 = sshll.u32 [#allocation5], 4
      %s39 = int_to_ptr.vmem [resolvable:$true] %s38
      %41 = dma.vmem_to_hbm [thread:$0]  %s39, 128, %s1, [#allocation4]
    $region17: #{tpu_custom_call.1} parent=1 // pred_fallthru
      _
    // Predicated region
    $region18: #{tpu_custom_call.1} parent=1 // pred_check
      _
    $region19: #{tpu_custom_call.1} parent=1 // pred_check_branch
      %43 = sbr.rel (0) target = $region21
    $region20: #{tpu_custom_call.1} parent=1 // pred_region
      %44 = dma.done [#allocation4], 128
    $region21: #{tpu_custom_call.1} parent=1 // pred_fallthru
      _
    %45 = vsyncpa [#allocation3], 1
    %46 = vsyncpa [#allocation4], 1

</llo_original>
